<compile_context>
chip_gen: v6e
topology: v6e:2x2x1
jax: 0.10.0
libtpu: 0.0.40
codegen_flags: <defaults>
</compile_context>

<pallas_src>
import jax
import jax.numpy as jnp
from jax.experimental import pallas as pl
from jax.experimental.pallas import tpu as pltpu

EPS = 1e-5
SCALE = 2.0  # temp=False -> fixed python scalar 2.0


def coscls_kernel(x_ref, w_ref, o_ref):
    # x_ref: (C, TM)   pixel tile (batch dim squeezed), native dtype
    # w_ref: (NCLS, C) full 1x1-conv weight (same block every step -> resident)
    # o_ref: (NCLS, TM) output tile
    x = x_ref[...]
    c = x_ref.shape[0]

    if x.dtype == jnp.float32:
        # Exact f32 reduction; no extra copy since x is already f32.
        sumsq = jnp.sum(x * x, axis=0, keepdims=True)                    # (1, TM)
    else:
        # Sub-32-bit inputs: square in native dtype, accumulate in f32 on the
        # MXU (free vector-extended slot, avoids a full f32 copy of the tile).
        ones_row = jnp.ones((1, c), dtype=x.dtype)
        sumsq = jnp.dot(ones_row, x * x,
                        preferred_element_type=jnp.float32)              # (1, TM)

    # F.normalize: x / max(||x||, eps) == x * rsqrt(max(sumsq, eps^2)).
    # Fold the 2.0 scale into the (1, TM) vector so the (NCLS, TM) result gets
    # a single broadcast multiply.
    inv_norm = SCALE * jax.lax.rsqrt(jnp.maximum(sumsq, EPS * EPS))      # (1, TM)

    s = jnp.dot(w_ref[...], x, preferred_element_type=jnp.float32)       # (NCLS, TM)
    o_ref[...] = (s * inv_norm).astype(o_ref.dtype)


def _round_up(v, m):
    return -(-v // m) * m


def coscls_forward(x_nchw, weight, *, vmem_budget_bytes=24 << 20, tm_max=4096):
    """x_nchw: (N, C, H, W); weight: (n_classes, C) (1x1 conv weight squeezed)."""
    n, c, h, w_sp = x_nchw.shape
    n_cls, c_w = weight.shape
    assert c_w == c
    hw = h * w_sp

    x_dsize = jnp.dtype(x_nchw.dtype).itemsize
    w_dsize = jnp.dtype(weight.dtype).itemsize
    out_dsize = x_dsize

    hw_128 = _round_up(hw, 128)

    # --- VMEM-aware pixel-tile size (x and out are double-buffered) ---------
    per_col128 = 128 * (2 * c * x_dsize + 2 * n_cls * out_dsize)
    max_cols = max(1, vmem_budget_bytes // per_col128)
    tm = max(128, min(tm_max, max_cols * 128, hw_128))

    # --- make sure the parallel grid has >= 2 steps (v7x dual TensorCore) ---
    if n * pl.cdiv(hw, tm) < 2 and hw > 128:
        tm = max(128, _round_up(-(-hw // 2), 128))

    grid = (n, pl.cdiv(hw, tm))

    # No padding / slicing: Pallas masks the ragged last pixel tile.
    x_flat = x_nchw.reshape(n, c, hw)   # free reshape, no transpose

    # --- scheduler hints -----------------------------------------------------
    flops = 2 * n * n_cls * c * hw + 3 * n * c * hw
    bytes_accessed = (n * c * hw * x_dsize
                      + n * n_cls * hw * out_dsize
                      + n_cls * c * w_dsize)
    cost = pl.CostEstimate(flops=flops,
                           transcendentals=n * hw,
                           bytes_accessed=bytes_accessed)

    vmem_live = (2 * c * tm * x_dsize          # x double buffer
                 + 2 * n_cls * tm * out_dsize  # out double buffer
                 + n_cls * c * w_dsize)        # resident weight
    vmem_limit = int(min(max(2 * vmem_live + (1 << 20), 16 << 20), 48 << 20))

    out = pl.pallas_call(
        coscls_kernel,
        out_shape=jax.ShapeDtypeStruct((n, n_cls, hw), x_nchw.dtype),
        grid_spec=pltpu.PrefetchScalarGridSpec(
            num_scalar_prefetch=0,
            grid=grid,
            in_specs=[
                # (batch squeezed, full C, tm pixels)
                pl.BlockSpec((None, c, tm), lambda b, i: (b, 0, i)),
                # full weight, same block every step -> stays resident in VMEM
                pl.BlockSpec((n_cls, c), lambda b, i: (0, 0)),
            ],
            out_specs=pl.BlockSpec((None, n_cls, tm), lambda b, i: (b, 0, i)),
        ),
        compiler_params=pltpu.CompilerParams(
            dimension_semantics=("parallel", "parallel"),
            vmem_limit_bytes=vmem_limit,
        ),
        cost_estimate=cost,
    )(x_flat, weight)

    return out.reshape(n, n_cls, h, w_sp)


def coscls_reference(x_nchw, weight):
    x = x_nchw.astype(jnp.float32)
    norm = jnp.sqrt(jnp.sum(x * x, axis=1, keepdims=True))
    x_n = x / jnp.maximum(norm, EPS)
    cos = jnp.einsum("nchw,kc->nkhw", x_n, weight.astype(jnp.float32))
    return SCALE * cos


if __name__ == "__main__":
    key = jax.random.PRNGKey(0)
    kx, kw, kx2 = jax.random.split(key, 3)

    # Test 1: small shapes consistent with the module (in_dim=32, n_classes=2),
    # batch=2, spatial 16x16 (pixel axis divides the tile evenly).
    N, C, H, W = 2, 32, 16, 16
    N_CLASSES = 2
    x = jax.random.normal(kx, (N, C, H, W), dtype=jnp.float32)
    weight = 0.1 * jax.random.normal(kw, (N_CLASSES, C), dtype=jnp.float32)

    out = jax.block_until_ready(coscls_forward(x, weight))
    ref = coscls_reference(x, weight)
    assert out.shape == (N, N_CLASSES, H, W)
    assert jnp.allclose(out, ref, atol=1e-4, rtol=1e-4), "mismatch vs reference (even)"

    # Test 2: single image with a ragged pixel count (18x18 = 324 pixels) ->
    # exercises the no-pad ragged last tile and the forced 2-way pixel split.
    x2 = jax.random.normal(kx2, (1, C, 18, 18), dtype=jnp.float32)
    out2 = jax.block_until_ready(coscls_forward(x2, weight))
    ref2 = coscls_reference(x2, weight)
    assert out2.shape == (1, N_CLASSES, 18, 18)
    assert jnp.allclose(out2, ref2, atol=1e-4, rtol=1e-4), "mismatch vs reference (ragged)"

    print("KERNEL_OK")
</pallas_src>

<mosaic_0001>
module attributes {stable_mosaic.version = 11 : i64} {
  func.func @coscls_kernel(%arg0: i32, %arg1: i32, %arg2: memref<1x32x256xf32, #tpu.memory_space<vmem>>, %arg3: memref<2x32xf32, #tpu.memory_space<vmem>>, %arg4: memref<1x2x256xf32, #tpu.memory_space<vmem>>) attributes {dimension_semantics = [#tpu.dimension_semantics<parallel>, #tpu.dimension_semantics<parallel>], iteration_bounds = array<i64: 2, 1>, scalar_prefetch = 0 : i64, scratch_operands = 0 : i64, tpu.core_type = #tpu.core_type<tc>, window_params = [{transform_indices = @transform_0, window_bounds = array<i64: 1, 32, 256>}, {pipeline_mode = #tpu.pipeline_mode<synchronous>, transform_indices = @transform_1, window_bounds = array<i64: 2, 32>}, {transform_indices = @transform_2, window_bounds = array<i64: 1, 2, 256>}]} {
    %c0 = arith.constant 0 : index
    %c0_0 = arith.constant 0 : index
    %c0_1 = arith.constant 0 : index
    %0 = vector.load %arg2[%c0, %c0_0, %c0_1] : memref<1x32x256xf32, #tpu.memory_space<vmem>>, vector<1x32x256xf32>
    %1 = vector.shape_cast %0 : vector<1x32x256xf32> to vector<32x256xf32>
    %2 = arith.mulf %1, %1 : vector<32x256xf32>
    %cst = arith.constant dense<0.000000e+00> : vector<256xf32>
    %3 = vector.multi_reduction <add>, %2, %cst [0] : vector<32x256xf32> to vector<256xf32>
    %4 = vector.shape_cast %3 : vector<256xf32> to vector<1x256xf32>
    %cst_2 = arith.constant 1.000000e-10 : f32
    %5 = vector.broadcast %cst_2 : f32 to vector<1x256xf32>
    %6 = arith.maximumf %4, %5 : vector<1x256xf32>
    %7 = math.rsqrt %6 : vector<1x256xf32>
    %cst_3 = arith.constant 2.000000e+00 : f32
    %8 = vector.broadcast %cst_3 : f32 to vector<1x256xf32>
    %9 = arith.mulf %8, %7 : vector<1x256xf32>
    %c0_4 = arith.constant 0 : index
    %c0_5 = arith.constant 0 : index
    %10 = vector.load %arg3[%c0_4, %c0_5] : memref<2x32xf32, #tpu.memory_space<vmem>>, vector<2x32xf32>
    %cst_6 = arith.constant dense<0.000000e+00> : vector<2x256xf32>
    %11 = tpu.matmul %10, %1, %cst_6 {dimension_numbers = #tpu.dot_dimension_numbers<[1], [0], [0], [1], [0, 0, 1, 1], [], []>} : vector<2x32xf32>, vector<32x256xf32>, vector<2x256xf32> -> vector<2x256xf32>
    %12 = vector.broadcast %9 : vector<1x256xf32> to vector<2x256xf32>
    %13 = arith.mulf %11, %12 : vector<2x256xf32>
    %c0_7 = arith.constant 0 : index
    %c0_8 = arith.constant 0 : index
    %c0_9 = arith.constant 0 : index
    %14 = vector.load %arg4[%c0_7, %c0_8, %c0_9] : memref<1x2x256xf32, #tpu.memory_space<vmem>>, vector<1x2x256xf32>
    %15 = vector.shape_cast %14 : vector<1x2x256xf32> to vector<2x256xf32>
    %16 = vector.shape_cast %13 : vector<2x256xf32> to vector<1x2x256xf32>
    tpu.vector_store %arg4[%c0_7, %c0_8, %c0_9], %16 {strides = array<i32>} : memref<1x2x256xf32, #tpu.memory_space<vmem>>, vector<1x2x256xf32>,
    return
  }
  func.func @transform_0(%arg0: i32, %arg1: i32) -> (i32, i32, i32) {
    %c0_i32 = arith.constant 0 : i32
    %c0_i32_0 = arith.constant 0 : i32
    return %arg0, %c0_i32, %arg1 : i32, i32, i32
  }
  func.func @transform_1(%arg0: i32, %arg1: i32) -> (i32, i32) {
    %c0_i32 = arith.constant 0 : i32
    %c0_i32_0 = arith.constant 0 : i32
    %c0_i32_1 = arith.constant 0 : i32
    return %c0_i32, %c0_i32_0 : i32, i32
  }
  func.func @transform_2(%arg0: i32, %arg1: i32) -> (i32, i32, i32) {
    %c0_i32 = arith.constant 0 : i32
    %c0_i32_0 = arith.constant 0 : i32
    return %arg0, %c0_i32, %arg1 : i32, i32, i32
  }
}

</mosaic_0001>

<llo_original>
// kernel: tpu_custom_call.1
$region0: #{tpu_custom_call.1}
  #allocation0 [shape = 'u32[]', space=smem, size = 0x4, offset = 0x4, fixed_abs, tag = 'smem constant byte address 0x4 - core index']
  #allocation1 [shape = 'u32[144,128]{1,0:T(1,128)}', space=vmem, size = 0x12000, scoped, tag = 'internal scratch']
  %s0 = inlined_call_operand.hbm [shape: f32[2,32,256], index: 0, kind: input, shape index: {}]
  %s1 = inlined_call_operand.hbm [shape: f32[2,32], index: 1, kind: input, shape index: {}]
  %s2 = inlined_call_operand.hbm [shape: f32[2,2,256], index: 2, kind: output, shape index: {}]
  %s3 = sld [smem:[#allocation0]]
  $region49: #{tpu_custom_call.1} parent=0
    _
  %s5 = ssub.s32 1, %s3
  %s6 = scalar_select 0, %s5, %s3
  $region1: #{tpu_custom_call.1} parent=0
    #allocation2 [shape = 'u8[65536]{0}', space=vmem, size = 0x10000, scoped, tag = 'input window, operand 0']
    #allocation3 [shape = 's32[2]{0}', space=sflag, size = 0x8, scoped, tag = 'scoped memory for tpu_custom_call.1']
    #allocation4 [shape = 's32[2]{0}', space=sflag, size = 0x8, scoped, tag = 'scoped memory for tpu_custom_call.1']
    #allocation5 [shape = 'u8[1024]{0}', space=vmem, size = 0x400, scoped, tag = 'input window, operand 1, single buffered']
    #allocation6 [shape = 's32[1]{0}', space=sflag, size = 0x4, scoped, tag = 'scoped memory for tpu_custom_call.1']
    #allocation7 [shape = 'u8[4096]{0}', space=vmem, size = 0x1000, scoped, tag = 'output window, operand 0']
    %7 = vsyncpa [#allocation3], 0
    %s8 = scalar_lea.sflag [#allocation3], 1
    %9 = vsyncpa %s8, 0
    %10 = vsyncpa [#allocation6], 0
    %11 = vsyncpa [#allocation4], 0
    %s12 = scalar_lea.sflag [#allocation4], 1
    %13 = vsyncpa %s12, 0
    loop: start=0, step=1, limit=4
    $region2: #{tpu_custom_call.1} parent=1 // loop_pre_header
      _
    $region3: #{tpu_custom_call.1} parent=1 // loop_header
      %s15 = sphi 0, %s19
      %p16 = scmp.ge.s32.totalorder %s15, 4
      %s22 = sphi 0, %s34
      %s23 = sphi 0, %s30
      %s24 = sphi 0, %s22
      %s25 = sphi 0, %s23
      %s26 = sphi 0, %s24
      %s27 = sphi 0, %s25
      %s39 = sphi 0, %s41
      %s42 = sphi 0, %s39
      %s43 = sphi 0, %s42
      %s59 = sphi 0, %s43
      %s63 = sphi 0, %s63
      %s65 = sphi 0, %s63
      %s66 = sphi 0, %s65
      %s80 = sphi 0, %s66
      %s88 = sphi 0, %s90
      %s91 = sphi 0, %s88
      %s92 = sphi 0, %s91
      %s108 = sphi 0, %s92
    $region4: #{tpu_custom_call.1} parent=1 // loop_header_branch
      %18 = sbr.rel (%p16) target = $region8
    $region5: #{tpu_custom_call.1} parent=1 // loop_body
      %s20 = ssub.s32 %s15, 1
      %s21 = ssub.s32 %s15, 2
      %s28 = sadd.s32 1, %s23
      %p29 = scmp.ge.s32.totalorder %s28, 1
      %s30 = scalar_select %p29, 0, %s28
      %s31 = sadd.s32 1, %s22
      %s32 = scalar_select %p29, %s31, %s22
      %p33 = scmp.ge.s32.totalorder %s32, 2
      %s34 = scalar_select %p33, 0, %s32
      %s35 = ssub.s32 %s22, %s34
      %s36 = ssub.s32 %s23, %s30
      %s37 = sor.u32 %s35, %s36
      %p38 = scmp.eq.s32.totalorder %s37, 0
      %s40 = sadd.s32 %s39, 1
      %s41 = scalar_select %p38, %s39, %s40
      %p44 = pneg %p38
      %p45 = scmp.eq.s32.totalorder %s15, 1
      %p46 = por %p44, %p45
      %p47 = scmp.ne.s32.totalorder %s39, %s42
      %p48 = scmp.eq.s32.totalorder %s15, 0
      %p49 = por %p47, %p48
      %p50 = scmp.ne.s32.totalorder %s39, %s42
      %p51 = scmp.eq.s32.totalorder %s20, 1
      %p52 = por %p50, %p51
      %p53 = scmp.ne.s32.totalorder %s42, %s43
      %p54 = scmp.eq.s32.totalorder %s20, 0
      %p55 = por %p53, %p54
      %p56 = scmp.ne.s32.totalorder %s42, %s43
      %p57 = scmp.eq.s32.totalorder %s21, 1
      %p58 = por %p56, %p57
      %p60 = scmp.ne.s32.totalorder %s43, %s59
      %p61 = scmp.eq.s32.totalorder %s21, 0
      %p62 = por %p60, %p61
      %s64 = sadd.s32 %s63, 1
      %p67 = scmp.eq.s32.totalorder %s15, 1
      %p68 = scmp.ne.s32.totalorder %s63, %s65
      %p69 = scmp.eq.s32.totalorder %s15, 0
      %p70 = por %p68, %p69
      %p71 = scmp.ne.s32.totalorder %s63, %s65
      %p72 = scmp.eq.s32.totalorder %s20, 1
      %p73 = por %p71, %p72
      %p74 = scmp.ne.s32.totalorder %s65, %s66
      %p75 = scmp.eq.s32.totalorder %s20, 0
      %p76 = por %p74, %p75
      %p77 = scmp.ne.s32.totalorder %s65, %s66
      %p78 = scmp.eq.s32.totalorder %s21, 1
      %p79 = por %p77, %p78
      %p81 = scmp.ne.s32.totalorder %s66, %s80
      %p82 = scmp.eq.s32.totalorder %s21, 0
      %p83 = por %p81, %p82
      %s84 = ssub.s32 %s22, %s34
      %s85 = ssub.s32 %s23, %s30
      %s86 = sor.u32 %s84, %s85
      %p87 = scmp.eq.s32.totalorder %s86, 0
      %s89 = sadd.s32 %s88, 1
      %s90 = scalar_select %p87, %s88, %s89
      %p93 = pneg %p87
      %p94 = scmp.eq.s32.totalorder %s15, 1
      %p95 = por %p93, %p94
      %p96 = scmp.ne.s32.totalorder %s88, %s91
      %p97 = scmp.eq.s32.totalorder %s15, 0
      %p98 = por %p96, %p97
      %p99 = scmp.ne.s32.totalorder %s88, %s91
      %p100 = scmp.eq.s32.totalorder %s20, 1
      %p101 = por %p99, %p100
      %p102 = scmp.ne.s32.totalorder %s91, %s92
      %p103 = scmp.eq.s32.totalorder %s20, 0
      %p104 = por %p102, %p103
      %p105 = scmp.ne.s32.totalorder %s91, %s92
      %p106 = scmp.eq.s32.totalorder %s21, 1
      %p107 = por %p105, %p106
      %p109 = scmp.ne.s32.totalorder %s92, %s108
      %p110 = scmp.eq.s32.totalorder %s21, 0
      %p111 = por %p109, %p110
      %p112 = scmp.le.s32.totalorder 1, %s15
      %p113 = scmp.lt.s32.totalorder %s15, 3
      %p114 = pnand %p112, %p113
      %p115 = pneg %p114
      // Predicated region
      $region9: #{tpu_custom_call.1} parent=5 // pred_check
        _
      $region10: #{tpu_custom_call.1} parent=5 // pred_check_branch
        %117 = sbr.rel (%p114) target = $region12
      $region11: #{tpu_custom_call.1} parent=5 // pred_region
        %s118 = ssub.s32 %s15, 1
        // Predicated region
        $region13: #{tpu_custom_call.1} parent=11 // pred_check
          %p119 = pneg %p76
        $region14: #{tpu_custom_call.1} parent=11 // pred_check_branch
          %121 = sbr.rel (%p119) target = $region16
        $region15: #{tpu_custom_call.1} parent=11 // pred_region
          %s123 = ssub.s32 32, 32
          %124 = vsyncadd [#allocation6], %s123
          %s126 = sshll.u32 [#allocation5], 4
          %s127 = int_to_ptr.vmem [resolvable:$true] %s126
          %129 = dma.hbm_to_vmem [thread:$0]  %s1, 32, %s127, [#allocation6]
        $region16: #{tpu_custom_call.1} parent=11 // pred_fallthru
          _
      $region12: #{tpu_custom_call.1} parent=5 // pred_fallthru
        _
      %p130 = scmp.lt.s32.totalorder %s15, 2
      // Predicated region
      $region17: #{tpu_custom_call.1} parent=5 // pred_check
        %p131 = pneg %p130
      $region18: #{tpu_custom_call.1} parent=5 // pred_check_branch
        %133 = sbr.rel (%p131) target = $region20
      $region19: #{tpu_custom_call.1} parent=5 // pred_region
        // Predicated region
        $region21: #{tpu_custom_call.1} parent=19 // pred_check
          %p134 = pneg %p49
        $region22: #{tpu_custom_call.1} parent=19 // pred_check_branch
          %136 = sbr.rel (%p134) target = $region24
        $region23: #{tpu_custom_call.1} parent=19 // pred_region
          %s137 = sand.u32 %s39, 1
          %s138 = scalar_lea.sflag [#allocation3], %s137
          %s139 = sand.u32 %s39, 1
          %s140 = smul.addr %s139, 64
          %s141 = scalar_lea.vmem [#allocation2], %s140
          %s142 = smul.u32 2, %s23
          %s144 = ssub.s32 1024, 1024
          %145 = vsyncadd %s138, %s144
          %s146 = smul.addr %s22, 8
          %s147 = sadd.s32 %s142, %s146
          %s148 = smul.addr %s147, 128
          %s149 = scalar_lea.hbm %s0, %s148
          %s150 = sshll.u32 %s141, 4
          %s151 = int_to_ptr.vmem [resolvable:$true] %s150
          %156 = dma.hbm_to_vmem [thread:$0]  %s149, 1024, %s151, %s138, 256, 256, 16
        $region24: #{tpu_custom_call.1} parent=19 // pred_fallthru
          _
      $region20: #{tpu_custom_call.1} parent=5 // pred_fallthru
        _
      %p157 = scmp.le.s32.totalorder 1, %s15
      %p158 = scmp.lt.s32.totalorder %s15, 3
      %p159 = pnand %p157, %p158
      %p160 = pneg %p159
      // Predicated region
      $region25: #{tpu_custom_call.1} parent=5 // pred_check
        _
      $region26: #{tpu_custom_call.1} parent=5 // pred_check_branch
        %162 = sbr.rel (%p159) target = $region28
      $region27: #{tpu_custom_call.1} parent=5 // pred_region
        %s163 = ssub.s32 %s15, 1
        %s164 = sand.u32 %s42, 1
        %s165 = scalar_lea.sflag [#allocation3], %s164
        %s166 = sand.u32 %s42, 1
        %s167 = smul.addr %s166, 64
        %s168 = scalar_lea.vmem [#allocation2], %s167
        // Predicated region
        $region29: #{tpu_custom_call.1} parent=27 // pred_check
          %p169 = pneg %p55
        $region30: #{tpu_custom_call.1} parent=27 // pred_check_branch
          %171 = sbr.rel (%p169) target = $region32
        $region31: #{tpu_custom_call.1} parent=27 // pred_region
          %172 = dma.done %s165, 1024
        $region32: #{tpu_custom_call.1} parent=27 // pred_fallthru
          _
        // Predicated region
        $region33: #{tpu_custom_call.1} parent=27 // pred_check
          %p173 = pneg %p76
        $region34: #{tpu_custom_call.1} parent=27 // pred_check_branch
          %175 = sbr.rel (%p173) target = $region36
        $region35: #{tpu_custom_call.1} parent=27 // pred_region
          %176 = dma.done [#allocation6], 32
        $region36: #{tpu_custom_call.1} parent=27 // pred_fallthru
          _
        %s177 = sand.u32 %s42, 1
        %s178 = scalar_lea.sflag [#allocation3], %s177
        %s179 = sand.u32 %s42, 1
        %s180 = smul.addr %s179, 64
        %s181 = scalar_lea.vmem [#allocation2], %s180
        %p182 = pneg %p55
        %p183 = pneg %p52
        %p184 = pneg %p76
        %p185 = pneg %p73
        %p186 = pneg %p104
        %p187 = pneg %p101
        %s188 = sand.u32 %s91, 1
        %s189 = scalar_lea.sflag [#allocation4], %s188
        %s190 = sand.u32 %s91, 1
        %s191 = smul.addr %s190, 4
        %s192 = scalar_lea.vmem [#allocation7], %s191
        %s193 = smul.u32 2, %s25
        %s194 = smul.u32 2, %s25
        %v195 = vld [vmem:[%s168] sm:$0xff]
        %v196 = vld [vmem:[%s168 + $0x8] sm:$0xff]
        %v197 = vld [vmem:[%s168 + $0x10] sm:$0xff]
        %v198 = vld [vmem:[%s168 + $0x18] sm:$0xff]
        %v199 = vld [vmem:[%s168 + $0x20] sm:$0xff]
        %v200 = vld [vmem:[%s168 + $0x28] sm:$0xff]
        %v201 = vld [vmem:[%s168 + $0x30] sm:$0xff]
        %v202 = vld [vmem:[%s168 + $0x38] sm:$0xff]
        %v203 = vmul.f32 %v195, %v195
        %v204 = vmul.f32 %v196, %v196
        %v205 = vmul.f32 %v197, %v197
        %v206 = vmul.f32 %v198, %v198
        %v207 = vmul.f32 %v199, %v199
        %v208 = vmul.f32 %v200, %v200
        %v209 = vmul.f32 %v201, %v201
        %v210 = vmul.f32 %v202, %v202
        %v211 = vadd.f32 %v203, %v205
        %v212 = vadd.f32 %v211, %v207
        %v213 = vadd.f32 %v212, %v209
        %v214 = vrot.slane %v213, 4
        %v215 = vadd.f32 %v213, %v214
        %v216 = vrot.slane %v215, 2
        %v217 = vadd.f32 %v215, %v216
        %v218 = vrot.slane %v217, 1
        %v219 = vadd.f32 %v217, %v218
        %v220 = vadd.f32 %v204, %v206
        %v221 = vadd.f32 %v220, %v208
        %v222 = vadd.f32 %v221, %v210
        %v223 = vrot.slane %v222, 4
        %v224 = vadd.f32 %v222, %v223
        %v225 = vrot.slane %v224, 2
        %v226 = vadd.f32 %v224, %v225
        %v227 = vrot.slane %v226, 1
        %v228 = vadd.f32 %v226, %v227
        %v229 = vmax.f32 %v219, 1e-10
        %v230 = vmax.f32 %v228, 1e-10
        %v231 = vrsqrt.pop %v229
        %v232 = vrsqrt.pop %v230
        %v233 = vmul.f32 %v231, 2.0
        %v234 = vmul.f32 %v232, 2.0
        %v235 = vld [vmem:[#allocation5] sm:$0x3]
        %vm236 = vcmask 261120
        %v238 = vsel %vm236, %v235, 0
        %240 = vmatprep.subr.mxu0 0.0
        %241 = vmatpush1.msra.mxu0 0.0
        %242 = vmatprep.subr.mxu0 0.0
        %243 = vmatpush1.msra.mxu0 0.0
        %244 = vmatprep.subr.mxu0 0.0
        %245 = vmatpush1.msra.mxu0 0.0
        %246 = vmatprep.subr.mxu0 0.0
        %247 = vmatpush1.msra.mxu0 0.0
        %248 = vmatprep.subr.mxu0 0.0
        %249 = vmatpush1.msra.mxu0 0.0
        %250 = vmatprep.subr.mxu0 0.0
        %251 = vmatpush1.msra.mxu0 0.0
        %252 = vmatprep.subr.mxu0 0.0
        %253 = vmatpush1.msra.mxu0 0.0
        %254 = vmatprep.subr.mxu0 0.0
        %255 = vmatpush1.msra.mxu0 0.0
        %256 = vmatprep.subr.mxu0 0.0
        %257 = vmatpush1.msra.mxu0 0.0
        %258 = vmatprep.subr.mxu0 0.0
        %259 = vmatpush1.msra.mxu0 0.0
        %260 = vmatprep.subr.mxu0 0.0
        %261 = vmatpush1.msra.mxu0 0.0
        %262 = vmatprep.subr.mxu0 0.0
        %263 = vmatpush1.msra.mxu0 0.0
        %264 = vmatprep.subr.mxu0 %v202
        %265 = vmatpush1.msra.mxu0 %v201
        %266 = vmatprep.subr.mxu0 %v200
        %267 = vmatpush1.msra.mxu0 %v199
        %268 = vmatprep.subr.mxu0 %v198
        %269 = vmatpush1.msra.mxu0 %v197
        %270 = vmatprep.subr.mxu0 %v196
        %271 = vmatpush1.msra.mxu0 %v195
        %272 = vmatprep.subr.mxu0 0.0
        %273 = vmatpush2.msra.mxu0 0.0
        %274 = vmatprep.subr.mxu0 0.0
        %275 = vmatpush2.msra.mxu0 0.0
        %276 = vmatprep.subr.mxu0 0.0
        %277 = vmatpush2.msra.mxu0 0.0
        %278 = vmatprep.subr.mxu0 0.0
        %279 = vmatpush2.msra.mxu0 0.0
        %280 = vmatprep.subr.mxu0 0.0
        %281 = vmatpush2.msra.mxu0 0.0
        %282 = vmatprep.subr.mxu0 0.0
        %283 = vmatpush2.msra.mxu0 0.0
        %284 = vmatprep.subr.mxu0 0.0
        %285 = vmatpush2.msra.mxu0 0.0
        %286 = vmatprep.subr.mxu0 0.0
        %287 = vmatpush2.msra.mxu0 0.0
        %288 = vmatprep.subr.mxu0 0.0
        %289 = vmatpush2.msra.mxu0 0.0
        %290 = vmatprep.subr.mxu0 0.0
        %291 = vmatpush2.msra.mxu0 0.0
        %292 = vmatprep.subr.mxu0 0.0
        %293 = vmatpush2.msra.mxu0 0.0
        %294 = vmatprep.subr.mxu0 0.0
        %295 = vmatpush2.msra.mxu0 0.0
        %296 = vmatprep.subr.mxu0 0.0
        %297 = vmatpush2.msra.mxu0 0.0
        %298 = vmatprep.subr.mxu0 0.0
        %299 = vmatpush2.msra.mxu0 0.0
        %300 = vmatprep.subr.mxu0 0.0
        %301 = vmatpush2.msra.mxu0 0.0
        %302 = vmatprep.subr.mxu0 0.0
        %303 = vmatpush2.msra.mxu0 0.0
        %304 = vmatprep.mubr.f32.mxu0 0.0
        %305 = vmatmul.mubr.f32.gmra.mxu0 %v238
        %v306 = vpop.f32.mrf.mxu0
        %v307 = vadd.f32 0.0, %v306
        %v308 = vpop.f32.mrf.mxu0
        %v309 = vadd.f32 0.0, %v308
        %310 = vdwg.mxu0
        %v311 = vmul.f32 %v307, %v233
        %v312 = vmul.f32 %v309, %v234
        %v315 = vcombine.low %v311, %v312
        %v317 = vunpack.c.l.s4 1983009808
        %v318 = vunpack.c.0.s8 %v317
        %v319 = vlaneseq
        %v320 = vshrl.u32 %v319, 7
        %v321 = vsub.s32 %v318, %v320
        %v322 = vrot.slane %v315, %v321
        %324 = vst [vmem:[%s192] sm:$0xf] %v322
        %s325 = sand.u32 %s91, 1
        %s326 = scalar_lea.sflag [#allocation4], %s325
        %s327 = sand.u32 %s91, 1
        %s328 = smul.addr %s327, 4
        %s329 = scalar_lea.vmem [#allocation7], %s328
        // Predicated region
        $region37: #{tpu_custom_call.1} parent=27 // pred_check
          %p330 = pneg %p101
        $region38: #{tpu_custom_call.1} parent=27 // pred_check_branch
          %332 = sbr.rel (%p330) target = $region40
        $region39: #{tpu_custom_call.1} parent=27 // pred_region
          %s333 = smul.u32 2, %s25
          %s335 = ssub.s32 64, 64
          %336 = vsyncadd %s326, %s335
          %s337 = smul.addr %s24, 2
          %s338 = sadd.s32 %s333, %s337
          %s339 = smul.addr %s338, 32
          %s340 = scalar_lea.hbm %s2, %s339
          %s342 = sshll.u32 %s329, 4
          %s343 = int_to_ptr.vmem [resolvable:$true] %s342
          %345 = dma.vmem_to_hbm [thread:$0]  %s343, 64, %s340, %s326
        $region40: #{tpu_custom_call.1} parent=27 // pred_fallthru
          _
      $region28: #{tpu_custom_call.1} parent=5 // pred_fallthru
        _
      %p346 = scmp.le.s32.totalorder 2, %s15
      // Predicated region
      $region41: #{tpu_custom_call.1} parent=5 // pred_check
        %p347 = pneg %p346
      $region42: #{tpu_custom_call.1} parent=5 // pred_check_branch
        %349 = sbr.rel (%p347) target = $region44
      $region43: #{tpu_custom_call.1} parent=5 // pred_region
        %s350 = ssub.s32 %s15, 2
        // Predicated region
        $region45: #{tpu_custom_call.1} parent=43 // pred_check
          %p351 = pneg %p107
        $region46: #{tpu_custom_call.1} parent=43 // pred_check_branch
          %353 = sbr.rel (%p351) target = $region48
        $region47: #{tpu_custom_call.1} parent=43 // pred_region
          %s354 = sand.u32 %s92, 1
          %s355 = scalar_lea.sflag [#allocation4], %s354
          %s356 = sand.u32 %s92, 1
          %s357 = smul.addr %s356, 4
          %s358 = scalar_lea.vmem [#allocation7], %s357
          %359 = dma.done %s355, 64
        $region48: #{tpu_custom_call.1} parent=43 // pred_fallthru
          _
      $region44: #{tpu_custom_call.1} parent=5 // pred_fallthru
        _
    $region6: #{tpu_custom_call.1} parent=1 // loop_footer
      %s19 = sadd.s32 1, %s15
    $region7: #{tpu_custom_call.1} parent=1 // loop_footer_branch
      %14 = sbr.rel target = $region3
    $region8: #{tpu_custom_call.1} parent=1 // loop_exit
      _
    %360 = vsyncpa [#allocation3], 1
    %s361 = scalar_lea.sflag [#allocation3], 1
    %362 = vsyncpa %s361, 1
    %363 = vsyncpa [#allocation6], 1
    %364 = vsyncpa [#allocation4], 1
    %s365 = scalar_lea.sflag [#allocation4], 1
    %366 = vsyncpa %s365, 1

</llo_original>
